<compile_context>
chip_gen: v6e
topology: v6e:2x2x1
jax: 0.10.0
libtpu: 0.0.40
codegen_flags: <defaults>
</compile_context>

<pallas_src>
import functools
import math

import jax
import jax.numpy as jnp
from jax import lax
from jax.experimental import pallas as pl
from jax.experimental.pallas import tpu as pltpu


# --------------------------------------------------------------------------- #
# Kernel 1: fused Q/K/V projection (q pre-scaled by 1/sqrt(d_out)), tiled over T
# --------------------------------------------------------------------------- #
def _qkv_proj_kernel(x_ref, wq_ref, wk_ref, wv_ref, q_ref, k_ref, v_ref, *, scale):
    x = x_ref[...]
    q = jnp.dot(x, wq_ref[...], preferred_element_type=jnp.float32)
    q_ref[...] = (q * scale).astype(q_ref.dtype)
    k_ref[...] = jnp.dot(x, wk_ref[...],
                         preferred_element_type=jnp.float32).astype(k_ref.dtype)
    v_ref[...] = jnp.dot(x, wv_ref[...],
                         preferred_element_type=jnp.float32).astype(v_ref.dtype)


def _project_qkv(x, wq_t, wk_t, wv_t, *, tp):
    T, d_in = x.shape
    d_out = wq_t.shape[1]
    scale = 1.0 / math.sqrt(float(d_out))

    qkv_shape = jax.ShapeDtypeStruct((T, d_out), x.dtype)
    w_spec = pl.BlockSpec((d_in, d_out), lambda i: (0, 0))
    out_spec = pl.BlockSpec((tp, d_out), lambda i: (i, 0))

    return pl.pallas_call(
        functools.partial(_qkv_proj_kernel, scale=scale),
        out_shape=(qkv_shape, qkv_shape, qkv_shape),
        grid_spec=pltpu.PrefetchScalarGridSpec(
            num_scalar_prefetch=0,
            grid=(T // tp,),
            in_specs=[
                pl.BlockSpec((tp, d_in), lambda i: (i, 0)),   # x rows
                w_spec, w_spec, w_spec,                        # W_q^T, W_k^T, W_v^T
            ],
            out_specs=(out_spec, out_spec, out_spec),
        ),
        compiler_params=pltpu.CompilerParams(
            dimension_semantics=("parallel",),
            vmem_limit_bytes=64 * 1024 * 1024),
    )(x, wq_t, wk_t, wv_t)


# --------------------------------------------------------------------------- #
# Kernel 2: causal flash attention over pre-projected q, k, v
# --------------------------------------------------------------------------- #
def _flash_attn_kernel(q_ref, k_ref, v_ref, o_ref, m_sc, l_sc, acc_sc):
    qi = pl.program_id(0)          # query-tile index  (parallel)
    ki = pl.program_id(1)          # kv-tile index     (arbitrary / reduction)

    tq = q_ref.shape[0]
    tk = k_ref.shape[0]
    q_start = qi * tq
    kv_start = ki * tk

    @pl.when(ki == 0)
    def _init():
        m_sc[...] = jnp.full_like(m_sc, -jnp.inf)
        l_sc[...] = jnp.zeros_like(l_sc)
        acc_sc[...] = jnp.zeros_like(acc_sc)

    def _scores():
        # q @ k^T without materializing k.T: contract the last axes (MXU, f32 acc).
        return lax.dot_general(q_ref[...], k_ref[...], (((1,), (1,)), ((), ())),
                               preferred_element_type=jnp.float32)

    def _online_softmax_update(s):
        m_prev = m_sc[...]
        m_new = jnp.maximum(m_prev, jnp.max(s, axis=-1, keepdims=True))
        alpha = jnp.exp(m_prev - m_new)
        p = jnp.exp(s - m_new)
        l_sc[...] = alpha * l_sc[...] + jnp.sum(p, axis=-1, keepdims=True)
        acc_sc[...] = alpha * acc_sc[...] + jnp.dot(
            p.astype(v_ref.dtype), v_ref[...], preferred_element_type=jnp.float32)
        m_sc[...] = m_new

    has_work = kv_start <= q_start + (tq - 1)   # tile has >=1 unmasked entry
    straddles = kv_start + (tk - 1) > q_start   # tile crosses the causal diagonal

    @pl.when(jnp.logical_and(has_work, jnp.logical_not(straddles)))
    def _interior_tile():
        # Entirely at/below the diagonal: skip mask construction entirely.
        _online_softmax_update(_scores())

    @pl.when(jnp.logical_and(has_work, straddles))
    def _diagonal_tile():
        s = _scores()
        row = q_start + lax.broadcasted_iota(jnp.int32, s.shape, 0)
        col = kv_start + lax.broadcasted_iota(jnp.int32, s.shape, 1)
        # Large finite negative (not -inf): masked cols underflow to 0 in exp.
        # Every processed row has >=1 unmasked col at ki=0, so no NaNs.
        _online_softmax_update(jnp.where(col > row, -1e30, s))

    @pl.when(ki == pl.num_programs(1) - 1)
    def _finalize():
        # Approximate reciprocal runs on the EUP slot (essentially free).
        o_ref[...] = (acc_sc[...] *
                      pl.reciprocal(l_sc[...], approx=True)).astype(o_ref.dtype)


def causal_self_attention(x, wq_t, wk_t, wv_t, *, tq=None, tk=None):
    """x: (T, d_in); w*_t: (d_in, d_out) -- transposed nn.Linear weights (y = x @ w_t)."""
    T, d_in = x.shape
    d_out = wq_t.shape[1]

    tq = min(T, 256) if tq is None else tq
    tk = min(T, 256) if tk is None else tk
    assert T % tq == 0 and T % tk == 0, "T must be divisible by the tile sizes"

    # 1) Project q (pre-scaled), k, v exactly once (hoisted out of the attention grid).
    q, k, v = _project_qkv(x, wq_t, wk_t, wv_t, tp=tq)

    # 2) Flash attention.  Clamped k/v index_maps make fully-masked (above-diagonal)
    #    KV tiles repeat the previous block index so their HBM->VMEM DMA is elided;
    #    the kernel separately skips their compute via pl.when.
    def kv_index_map(qi, ki):
        return (jnp.minimum(ki, (qi * tq + tq - 1) // tk), 0)

    grid = (T // tq, T // tk)
    return pl.pallas_call(
        _flash_attn_kernel,
        out_shape=jax.ShapeDtypeStruct((T, d_out), x.dtype),
        grid_spec=pltpu.PrefetchScalarGridSpec(
            num_scalar_prefetch=0,
            grid=grid,
            in_specs=[
                pl.BlockSpec((tq, d_out), lambda qi, ki: (qi, 0)),  # q tile
                pl.BlockSpec((tk, d_out), kv_index_map),            # k tile (clamped)
                pl.BlockSpec((tk, d_out), kv_index_map),            # v tile (clamped)
            ],
            out_specs=pl.BlockSpec((tq, d_out), lambda qi, ki: (qi, 0)),
            scratch_shapes=[
                pltpu.VMEM((tq, 1), jnp.float32),       # running max m
                pltpu.VMEM((tq, 1), jnp.float32),       # running denom l
                pltpu.VMEM((tq, d_out), jnp.float32),   # output accumulator
            ],
        ),
        compiler_params=pltpu.CompilerParams(
            dimension_semantics=("parallel", "arbitrary"),
            vmem_limit_bytes=64 * 1024 * 1024),
    )(q, k, v)


def _reference(x, wq_t, wk_t, wv_t):
    """Pure-JAX reference mirroring the PyTorch forward (dropout inactive)."""
    hi = jax.lax.Precision.HIGHEST
    q = jnp.dot(x, wq_t, precision=hi)
    k = jnp.dot(x, wk_t, precision=hi)
    v = jnp.dot(x, wv_t, precision=hi)
    scores = jnp.dot(q, k.T, precision=hi)
    T = scores.shape[0]
    mask = jnp.triu(jnp.ones((T, T), dtype=bool), k=1)
    scores = jnp.where(mask, -jnp.inf, scores)
    w = jax.nn.softmax(scores / math.sqrt(k.shape[-1]), axis=-1)
    return jnp.dot(w, v, precision=hi)


if __name__ == "__main__":
    # ---- Module config from the PyTorch spec: d_in=3, d_out=2, T=6, dropout=0 ----
    d_in, d_out, context_length = 3, 2, 6
    x = jnp.array(
        [[0.43, 0.15, 0.89],
         [0.55, 0.87, 0.66],
         [0.57, 0.85, 0.66],
         [0.22, 0.58, 0.33],
         [0.77, 0.25, 0.11],
         [0.05, 0.80, 0.55]],
        dtype=jnp.float32,
    )
    key = jax.random.PRNGKey(0)
    kq, kk, kv = jax.random.split(key, 3)
    bound = 1.0 / math.sqrt(d_in)
    # PyTorch Linear weight is (d_out, d_in); we store its transpose (d_in, d_out).
    wq_t = jax.random.uniform(kq, (d_in, d_out), jnp.float32, -bound, bound)
    wk_t = jax.random.uniform(kk, (d_in, d_out), jnp.float32, -bound, bound)
    wv_t = jax.random.uniform(kv, (d_in, d_out), jnp.float32, -bound, bound)

    out = causal_self_attention(x, wq_t, wk_t, wv_t)
    out = jax.block_until_ready(out)
    ref = _reference(x, wq_t, wk_t, wv_t)
    assert out.shape == (context_length, d_out)
    assert jnp.allclose(out, ref, atol=2e-3, rtol=2e-3), (out, ref)

    # ---- Larger smoke test: bf16 MXU path, default 256 tiles -> grid 2x2,
    #      exercises the interior / diagonal-straddle / skipped-tile branches and
    #      the DMA-eliding clamped kv index_map; d_out=128 keeps stores lane-dense.
    T2, d2 = 512, 128
    k1, k2, k3, k4 = jax.random.split(jax.random.PRNGKey(1), 4)
    x2 = jax.random.normal(k1, (T2, d2), jnp.float32)
    b2 = 1.0 / math.sqrt(d2)
    wq2 = jax.random.uniform(k2, (d2, d2), jnp.float32, -b2, b2)
    wk2 = jax.random.uniform(k3, (d2, d2), jnp.float32, -b2, b2)
    wv2 = jax.random.uniform(k4, (d2, d2), jnp.float32, -b2, b2)

    out2 = causal_self_attention(
        x2.astype(jnp.bfloat16),
        wq2.astype(jnp.bfloat16),
        wk2.astype(jnp.bfloat16),
        wv2.astype(jnp.bfloat16),
    )
    out2 = jax.block_until_ready(out2)
    ref2 = _reference(x2, wq2, wk2, wv2)
    assert out2.shape == (T2, d2)
    max_err = float(jnp.max(jnp.abs(out2.astype(jnp.float32) - ref2)))
    assert max_err < 5e-2, max_err

    print("KERNEL_OK")
</pallas_src>

<mosaic_0001>
module attributes {stable_mosaic.version = 11 : i64} {
  func.func @_qkv_proj_kernel(%arg0: i32, %arg1: memref<6x3xf32, #tpu.memory_space<vmem>>, %arg2: memref<3x2xf32, #tpu.memory_space<vmem>>, %arg3: memref<3x2xf32, #tpu.memory_space<vmem>>, %arg4: memref<3x2xf32, #tpu.memory_space<vmem>>, %arg5: memref<6x2xf32, #tpu.memory_space<vmem>>, %arg6: memref<6x2xf32, #tpu.memory_space<vmem>>, %arg7: memref<6x2xf32, #tpu.memory_space<vmem>>) attributes {dimension_semantics = [#tpu.dimension_semantics<parallel>], iteration_bounds = array<i64: 1>, scalar_prefetch = 0 : i64, scratch_operands = 0 : i64, tpu.core_type = #tpu.core_type<tc>, window_params = [{transform_indices = @transform_0, window_bounds = array<i64: 6, 3>}, {pipeline_mode = #tpu.pipeline_mode<synchronous>, transform_indices = @transform_1, window_bounds = array<i64: 3, 2>}, {pipeline_mode = #tpu.pipeline_mode<synchronous>, transform_indices = @transform_2, window_bounds = array<i64: 3, 2>}, {pipeline_mode = #tpu.pipeline_mode<synchronous>, transform_indices = @transform_3, window_bounds = array<i64: 3, 2>}, {transform_indices = @transform_4, window_bounds = array<i64: 6, 2>}, {transform_indices = @transform_5, window_bounds = array<i64: 6, 2>}, {transform_indices = @transform_6, window_bounds = array<i64: 6, 2>}]} {
    %c0 = arith.constant 0 : index
    %c0_0 = arith.constant 0 : index
    %0 = vector.load %arg1[%c0, %c0_0] : memref<6x3xf32, #tpu.memory_space<vmem>>, vector<6x3xf32>
    %c0_1 = arith.constant 0 : index
    %c0_2 = arith.constant 0 : index
    %1 = vector.load %arg2[%c0_1, %c0_2] : memref<3x2xf32, #tpu.memory_space<vmem>>, vector<3x2xf32>
    %cst = arith.constant dense<0.000000e+00> : vector<6x2xf32>
    %2 = tpu.matmul %0, %1, %cst {dimension_numbers = #tpu.dot_dimension_numbers<[1], [0], [0], [1], [0, 0, 1, 1], [], []>} : vector<6x3xf32>, vector<3x2xf32>, vector<6x2xf32> -> vector<6x2xf32>
    %cst_3 = arith.constant 0.707106769 : f32
    %3 = vector.broadcast %cst_3 : f32 to vector<6x2xf32>
    %4 = arith.mulf %2, %3 : vector<6x2xf32>
    %c0_4 = arith.constant 0 : index
    %c0_5 = arith.constant 0 : index
    %5 = vector.load %arg5[%c0_4, %c0_5] : memref<6x2xf32, #tpu.memory_space<vmem>>, vector<6x2xf32>
    tpu.vector_store %arg5[%c0_4, %c0_5], %4 {strides = array<i32>} : memref<6x2xf32, #tpu.memory_space<vmem>>, vector<6x2xf32>,
    %c0_6 = arith.constant 0 : index
    %c0_7 = arith.constant 0 : index
    %6 = vector.load %arg3[%c0_6, %c0_7] : memref<3x2xf32, #tpu.memory_space<vmem>>, vector<3x2xf32>
    %cst_8 = arith.constant dense<0.000000e+00> : vector<6x2xf32>
    %7 = tpu.matmul %0, %6, %cst_8 {dimension_numbers = #tpu.dot_dimension_numbers<[1], [0], [0], [1], [0, 0, 1, 1], [], []>} : vector<6x3xf32>, vector<3x2xf32>, vector<6x2xf32> -> vector<6x2xf32>
    %c0_9 = arith.constant 0 : index
    %c0_10 = arith.constant 0 : index
    %8 = vector.load %arg6[%c0_9, %c0_10] : memref<6x2xf32, #tpu.memory_space<vmem>>, vector<6x2xf32>
    tpu.vector_store %arg6[%c0_9, %c0_10], %7 {strides = array<i32>} : memref<6x2xf32, #tpu.memory_space<vmem>>, vector<6x2xf32>,
    %c0_11 = arith.constant 0 : index
    %c0_12 = arith.constant 0 : index
    %9 = vector.load %arg4[%c0_11, %c0_12] : memref<3x2xf32, #tpu.memory_space<vmem>>, vector<3x2xf32>
    %cst_13 = arith.constant dense<0.000000e+00> : vector<6x2xf32>
    %10 = tpu.matmul %0, %9, %cst_13 {dimension_numbers = #tpu.dot_dimension_numbers<[1], [0], [0], [1], [0, 0, 1, 1], [], []>} : vector<6x3xf32>, vector<3x2xf32>, vector<6x2xf32> -> vector<6x2xf32>
    %c0_14 = arith.constant 0 : index
    %c0_15 = arith.constant 0 : index
    %11 = vector.load %arg7[%c0_14, %c0_15] : memref<6x2xf32, #tpu.memory_space<vmem>>, vector<6x2xf32>
    tpu.vector_store %arg7[%c0_14, %c0_15], %10 {strides = array<i32>} : memref<6x2xf32, #tpu.memory_space<vmem>>, vector<6x2xf32>,
    return
  }
  func.func @transform_0(%arg0: i32) -> (i32, i32) {
    %c0_i32 = arith.constant 0 : i32
    %c0_i32_0 = arith.constant 0 : i32
    return %arg0, %c0_i32 : i32, i32
  }
  func.func @transform_1(%arg0: i32) -> (i32, i32) {
    %c0_i32 = arith.constant 0 : i32
    %c0_i32_0 = arith.constant 0 : i32
    %c0_i32_1 = arith.constant 0 : i32
    return %c0_i32, %c0_i32_0 : i32, i32
  }
  func.func @transform_2(%arg0: i32) -> (i32, i32) {
    %c0_i32 = arith.constant 0 : i32
    %c0_i32_0 = arith.constant 0 : i32
    %c0_i32_1 = arith.constant 0 : i32
    return %c0_i32, %c0_i32_0 : i32, i32
  }
  func.func @transform_3(%arg0: i32) -> (i32, i32) {
    %c0_i32 = arith.constant 0 : i32
    %c0_i32_0 = arith.constant 0 : i32
    %c0_i32_1 = arith.constant 0 : i32
    return %c0_i32, %c0_i32_0 : i32, i32
  }
  func.func @transform_4(%arg0: i32) -> (i32, i32) {
    %c0_i32 = arith.constant 0 : i32
    %c0_i32_0 = arith.constant 0 : i32
    return %arg0, %c0_i32 : i32, i32
  }
  func.func @transform_5(%arg0: i32) -> (i32, i32) {
    %c0_i32 = arith.constant 0 : i32
    %c0_i32_0 = arith.constant 0 : i32
    return %arg0, %c0_i32 : i32, i32
  }
  func.func @transform_6(%arg0: i32) -> (i32, i32) {
    %c0_i32 = arith.constant 0 : i32
    %c0_i32_0 = arith.constant 0 : i32
    return %arg0, %c0_i32 : i32, i32
  }
}

</mosaic_0001>

<llo_original>
// kernel: tpu_custom_call.1
$region0: #{tpu_custom_call.1}
  #allocation0 [shape = 'u32[]', space=smem, size = 0x4, offset = 0x4, fixed_abs, tag = 'smem constant byte address 0x4 - core index']
  #allocation1 [shape = 'u32[144,128]{1,0:T(1,128)}', space=vmem, size = 0x12000, scoped, tag = 'internal scratch']
  %s0 = inlined_call_operand.vmem [shape: f32[6,3], index: 0, kind: input, shape index: {}]
  %s1 = inlined_call_operand.vmem [shape: f32[3,2], index: 1, kind: input, shape index: {}]
  %s2 = inlined_call_operand.vmem [shape: f32[3,2], index: 2, kind: input, shape index: {}]
  %s3 = inlined_call_operand.vmem [shape: f32[3,2], index: 3, kind: input, shape index: {}]
  %s4 = inlined_call_operand.vmem [shape: f32[6,2], index: 4, kind: output, shape index: {0}]
  %s5 = inlined_call_operand.vmem [shape: f32[6,2], index: 5, kind: output, shape index: {1}]
  %s6 = inlined_call_operand.vmem [shape: f32[6,2], index: 6, kind: output, shape index: {2}]
  %7 = xla_tuple %s4, %s5, %s6
  %s8 = sld [smem:[#allocation0]]
  $region42: #{tpu_custom_call.1} parent=0
    _
  %s10 = ssub.s32 1, %s8
  %s11 = scalar_select 0, %s10, %s8
  // Predicated region
  $region2: #{tpu_custom_call.1} parent=0 // pred_check
    _
  $region3: #{tpu_custom_call.1} parent=0 // pred_check_branch
    %13 = sbr.rel (0) target = $region5
  $region4: #{tpu_custom_call.1} parent=0 // pred_region
    _
  $region5: #{tpu_custom_call.1} parent=0 // pred_fallthru
    _
  // Predicated region
  $region6: #{tpu_custom_call.1} parent=0 // pred_check
    _
  $region7: #{tpu_custom_call.1} parent=0 // pred_check_branch
    %15 = sbr.rel (0) target = $region9
  $region8: #{tpu_custom_call.1} parent=0 // pred_region
    _
  $region9: #{tpu_custom_call.1} parent=0 // pred_fallthru
    _
  // Predicated region
  $region10: #{tpu_custom_call.1} parent=0 // pred_check
    _
  $region11: #{tpu_custom_call.1} parent=0 // pred_check_branch
    %17 = sbr.rel (0) target = $region13
  $region12: #{tpu_custom_call.1} parent=0 // pred_region
    _
  $region13: #{tpu_custom_call.1} parent=0 // pred_fallthru
    _
  // Predicated region
  $region14: #{tpu_custom_call.1} parent=0 // pred_check
    _
  $region15: #{tpu_custom_call.1} parent=0 // pred_check_branch
    %19 = sbr.rel (0) target = $region17
  $region16: #{tpu_custom_call.1} parent=0 // pred_region
    _
  $region17: #{tpu_custom_call.1} parent=0 // pred_fallthru
    _
  %v20 = vld [vmem:[%s0] sm:$0x3f]
  %v21 = vld [vmem:[%s1] sm:$0x7]
  %vm22 = vcmask 23552
  %v24 = vsel %vm22, %v20, 0
  %vm26 = vcmask 1042432
  %v28 = vsel %vm26, %v21, 0
  %30 = vmatprep.subr.mxu0 0.0
  %31 = vmatpush1.msra.mxu0 0.0
  %32 = vmatprep.subr.mxu0 0.0
  %33 = vmatpush1.msra.mxu0 0.0
  %34 = vmatprep.subr.mxu0 0.0
  %35 = vmatpush1.msra.mxu0 0.0
  %36 = vmatprep.subr.mxu0 0.0
  %37 = vmatpush1.msra.mxu0 0.0
  %38 = vmatprep.subr.mxu0 0.0
  %39 = vmatpush1.msra.mxu0 0.0
  %40 = vmatprep.subr.mxu0 0.0
  %41 = vmatpush1.msra.mxu0 0.0
  %42 = vmatprep.subr.mxu0 0.0
  %43 = vmatpush1.msra.mxu0 0.0
  %44 = vmatprep.subr.mxu0 0.0
  %45 = vmatpush1.msra.mxu0 0.0
  %46 = vmatprep.subr.mxu0 0.0
  %47 = vmatpush1.msra.mxu0 0.0
  %48 = vmatprep.subr.mxu0 0.0
  %49 = vmatpush1.msra.mxu0 0.0
  %50 = vmatprep.subr.mxu0 0.0
  %51 = vmatpush1.msra.mxu0 0.0
  %52 = vmatprep.subr.mxu0 0.0
  %53 = vmatpush1.msra.mxu0 0.0
  %54 = vmatprep.subr.mxu0 0.0
  %55 = vmatpush1.msra.mxu0 0.0
  %56 = vmatprep.subr.mxu0 0.0
  %57 = vmatpush1.msra.mxu0 0.0
  %58 = vmatprep.subr.mxu0 0.0
  %59 = vmatpush1.msra.mxu0 0.0
  %60 = vmatprep.subr.mxu0 0.0
  %61 = vmatpush1.msra.mxu0 %v28
  %62 = vmatprep.subr.mxu0 0.0
  %63 = vmatpush2.msra.mxu0 0.0
  %64 = vmatprep.subr.mxu0 0.0
  %65 = vmatpush2.msra.mxu0 0.0
  %66 = vmatprep.subr.mxu0 0.0
  %67 = vmatpush2.msra.mxu0 0.0
  %68 = vmatprep.subr.mxu0 0.0
  %69 = vmatpush2.msra.mxu0 0.0
  %70 = vmatprep.subr.mxu0 0.0
  %71 = vmatpush2.msra.mxu0 0.0
  %72 = vmatprep.subr.mxu0 0.0
  %73 = vmatpush2.msra.mxu0 0.0
  %74 = vmatprep.subr.mxu0 0.0
  %75 = vmatpush2.msra.mxu0 0.0
  %76 = vmatprep.subr.mxu0 0.0
  %77 = vmatpush2.msra.mxu0 0.0
  %78 = vmatprep.subr.mxu0 0.0
  %79 = vmatpush2.msra.mxu0 0.0
  %80 = vmatprep.subr.mxu0 0.0
  %81 = vmatpush2.msra.mxu0 0.0
  %82 = vmatprep.subr.mxu0 0.0
  %83 = vmatpush2.msra.mxu0 0.0
  %84 = vmatprep.subr.mxu0 0.0
  %85 = vmatpush2.msra.mxu0 0.0
  %86 = vmatprep.subr.mxu0 0.0
  %87 = vmatpush2.msra.mxu0 0.0
  %88 = vmatprep.subr.mxu0 0.0
  %89 = vmatpush2.msra.mxu0 0.0
  %90 = vmatprep.subr.mxu0 0.0
  %91 = vmatpush2.msra.mxu0 0.0
  %92 = vmatprep.subr.mxu0 0.0
  %93 = vmatpush2.msra.mxu0 0.0
  %94 = vmatprep.mubr.f32.mxu0 0.0
  %95 = vmatmul.mubr.f32.gmra.mxu0 %v24
  %v96 = vpop.f32.mrf.mxu0
  %v97 = vadd.f32 0.0, %v96
  %v98 = vpop.f32.mrf.mxu0
  %99 = vdwg.mxu0
  %v100 = vmul.f32 %v97, 0.70710677
  %vm101 = vcmask 13312
  %102 = vst.msk [vmem:[%s4] sm:$0x3f] %vm101, %v100
  %v103 = vld [vmem:[%s2] sm:$0x7]
  %v105 = vsel %vm26, %v103, 0
  %107 = vmatprep.subr.mxu0 0.0
  %108 = vmatpush1.msra.mxu0 0.0
  %109 = vmatprep.subr.mxu0 0.0
  %110 = vmatpush1.msra.mxu0 0.0
  %111 = vmatprep.subr.mxu0 0.0
  %112 = vmatpush1.msra.mxu0 0.0
  %113 = vmatprep.subr.mxu0 0.0
  %114 = vmatpush1.msra.mxu0 0.0
  %115 = vmatprep.subr.mxu0 0.0
  %116 = vmatpush1.msra.mxu0 0.0
  %117 = vmatprep.subr.mxu0 0.0
  %118 = vmatpush1.msra.mxu0 0.0
  %119 = vmatprep.subr.mxu0 0.0
  %120 = vmatpush1.msra.mxu0 0.0
  %121 = vmatprep.subr.mxu0 0.0
  %122 = vmatpush1.msra.mxu0 0.0
  %123 = vmatprep.subr.mxu0 0.0
  %124 = vmatpush1.msra.mxu0 0.0
  %125 = vmatprep.subr.mxu0 0.0
  %126 = vmatpush1.msra.mxu0 0.0
  %127 = vmatprep.subr.mxu0 0.0
  %128 = vmatpush1.msra.mxu0 0.0
  %129 = vmatprep.subr.mxu0 0.0
  %130 = vmatpush1.msra.mxu0 0.0
  %131 = vmatprep.subr.mxu0 0.0
  %132 = vmatpush1.msra.mxu0 0.0
  %133 = vmatprep.subr.mxu0 0.0
  %134 = vmatpush1.msra.mxu0 0.0
  %135 = vmatprep.subr.mxu0 0.0
  %136 = vmatpush1.msra.mxu0 0.0
  %137 = vmatprep.subr.mxu0 0.0
  %138 = vmatpush1.msra.mxu0 %v105
  %139 = vmatprep.subr.mxu0 0.0
  %140 = vmatpush2.msra.mxu0 0.0
  %141 = vmatprep.subr.mxu0 0.0
  %142 = vmatpush2.msra.mxu0 0.0
  %143 = vmatprep.subr.mxu0 0.0
  %144 = vmatpush2.msra.mxu0 0.0
  %145 = vmatprep.subr.mxu0 0.0
  %146 = vmatpush2.msra.mxu0 0.0
  %147 = vmatprep.subr.mxu0 0.0
  %148 = vmatpush2.msra.mxu0 0.0
  %149 = vmatprep.subr.mxu0 0.0
  %150 = vmatpush2.msra.mxu0 0.0
  %151 = vmatprep.subr.mxu0 0.0
  %152 = vmatpush2.msra.mxu0 0.0
  %153 = vmatprep.subr.mxu0 0.0
  %154 = vmatpush2.msra.mxu0 0.0
  %155 = vmatprep.subr.mxu0 0.0
  %156 = vmatpush2.msra.mxu0 0.0
  %157 = vmatprep.subr.mxu0 0.0
  %158 = vmatpush2.msra.mxu0 0.0
  %159 = vmatprep.subr.mxu0 0.0
  %160 = vmatpush2.msra.mxu0 0.0
  %161 = vmatprep.subr.mxu0 0.0
  %162 = vmatpush2.msra.mxu0 0.0
  %163 = vmatprep.subr.mxu0 0.0
  %164 = vmatpush2.msra.mxu0 0.0
  %165 = vmatprep.subr.mxu0 0.0
  %166 = vmatpush2.msra.mxu0 0.0
  %167 = vmatprep.subr.mxu0 0.0
  %168 = vmatpush2.msra.mxu0 0.0
  %169 = vmatprep.subr.mxu0 0.0
  %170 = vmatpush2.msra.mxu0 0.0
  %171 = vmatprep.mubr.f32.mxu0 0.0
  %172 = vmatmul.mubr.f32.gmra.mxu0 %v24
  %v173 = vpop.f32.mrf.mxu0
  %v174 = vadd.f32 0.0, %v173
  %v175 = vpop.f32.mrf.mxu0
  %176 = vdwg.mxu0
  %177 = vst.msk [vmem:[%s5] sm:$0x3f] %vm101, %v174
  %v178 = vld [vmem:[%s3] sm:$0x7]
  %v180 = vsel %vm26, %v178, 0
  %182 = vmatprep.subr.mxu0 0.0
  %183 = vmatpush1.msra.mxu0 0.0
  %184 = vmatprep.subr.mxu0 0.0
  %185 = vmatpush1.msra.mxu0 0.0
  %186 = vmatprep.subr.mxu0 0.0
  %187 = vmatpush1.msra.mxu0 0.0
  %188 = vmatprep.subr.mxu0 0.0
  %189 = vmatpush1.msra.mxu0 0.0
  %190 = vmatprep.subr.mxu0 0.0
  %191 = vmatpush1.msra.mxu0 0.0
  %192 = vmatprep.subr.mxu0 0.0
  %193 = vmatpush1.msra.mxu0 0.0
  %194 = vmatprep.subr.mxu0 0.0
  %195 = vmatpush1.msra.mxu0 0.0
  %196 = vmatprep.subr.mxu0 0.0
  %197 = vmatpush1.msra.mxu0 0.0
  %198 = vmatprep.subr.mxu0 0.0
  %199 = vmatpush1.msra.mxu0 0.0
  %200 = vmatprep.subr.mxu0 0.0
  %201 = vmatpush1.msra.mxu0 0.0
  %202 = vmatprep.subr.mxu0 0.0
  %203 = vmatpush1.msra.mxu0 0.0
  %204 = vmatprep.subr.mxu0 0.0
  %205 = vmatpush1.msra.mxu0 0.0
  %206 = vmatprep.subr.mxu0 0.0
  %207 = vmatpush1.msra.mxu0 0.0
  %208 = vmatprep.subr.mxu0 0.0
  %209 = vmatpush1.msra.mxu0 0.0
  %210 = vmatprep.subr.mxu0 0.0
  %211 = vmatpush1.msra.mxu0 0.0
  %212 = vmatprep.subr.mxu0 0.0
  %213 = vmatpush1.msra.mxu0 %v180
  %214 = vmatprep.subr.mxu0 0.0
  %215 = vmatpush2.msra.mxu0 0.0
  %216 = vmatprep.subr.mxu0 0.0
  %217 = vmatpush2.msra.mxu0 0.0
  %218 = vmatprep.subr.mxu0 0.0
  %219 = vmatpush2.msra.mxu0 0.0
  %220 = vmatprep.subr.mxu0 0.0
  %221 = vmatpush2.msra.mxu0 0.0
  %222 = vmatprep.subr.mxu0 0.0
  %223 = vmatpush2.msra.mxu0 0.0
  %224 = vmatprep.subr.mxu0 0.0
  %225 = vmatpush2.msra.mxu0 0.0
  %226 = vmatprep.subr.mxu0 0.0
  %227 = vmatpush2.msra.mxu0 0.0
  %228 = vmatprep.subr.mxu0 0.0
  %229 = vmatpush2.msra.mxu0 0.0
  %230 = vmatprep.subr.mxu0 0.0
  %231 = vmatpush2.msra.mxu0 0.0
  %232 = vmatprep.subr.mxu0 0.0
  %233 = vmatpush2.msra.mxu0 0.0
  %234 = vmatprep.subr.mxu0 0.0
  %235 = vmatpush2.msra.mxu0 0.0
  %236 = vmatprep.subr.mxu0 0.0
  %237 = vmatpush2.msra.mxu0 0.0
  %238 = vmatprep.subr.mxu0 0.0
  %239 = vmatpush2.msra.mxu0 0.0
  %240 = vmatprep.subr.mxu0 0.0
  %241 = vmatpush2.msra.mxu0 0.0
  %242 = vmatprep.subr.mxu0 0.0
  %243 = vmatpush2.msra.mxu0 0.0
  %244 = vmatprep.subr.mxu0 0.0
  %245 = vmatpush2.msra.mxu0 0.0
  %246 = vmatprep.mubr.f32.mxu0 0.0
  %247 = vmatmul.mubr.f32.gmra.mxu0 %v24
  %v248 = vpop.f32.mrf.mxu0
  %v249 = vadd.f32 0.0, %v248
  %v250 = vpop.f32.mrf.mxu0
  %251 = vdwg.mxu0
  %252 = vst.msk [vmem:[%s6] sm:$0x3f] %vm101, %v249
  // Predicated region
  $region18: #{tpu_custom_call.1} parent=0 // pred_check
    _
  $region19: #{tpu_custom_call.1} parent=0 // pred_check_branch
    %254 = sbr.rel (0) target = $region21
  $region20: #{tpu_custom_call.1} parent=0 // pred_region
    _
  $region21: #{tpu_custom_call.1} parent=0 // pred_fallthru
    _
  // Predicated region
  $region22: #{tpu_custom_call.1} parent=0 // pred_check
    _
  $region23: #{tpu_custom_call.1} parent=0 // pred_check_branch
    %256 = sbr.rel (0) target = $region25
  $region24: #{tpu_custom_call.1} parent=0 // pred_region
    _
  $region25: #{tpu_custom_call.1} parent=0 // pred_fallthru
    _
  // Predicated region
  $region26: #{tpu_custom_call.1} parent=0 // pred_check
    _
  $region27: #{tpu_custom_call.1} parent=0 // pred_check_branch
    %258 = sbr.rel (0) target = $region29
  $region28: #{tpu_custom_call.1} parent=0 // pred_region
    _
  $region29: #{tpu_custom_call.1} parent=0 // pred_fallthru
    _
  // Predicated region
  $region30: #{tpu_custom_call.1} parent=0 // pred_check
    _
  $region31: #{tpu_custom_call.1} parent=0 // pred_check_branch
    %260 = sbr.rel (0) target = $region33
  $region32: #{tpu_custom_call.1} parent=0 // pred_region
    _
  $region33: #{tpu_custom_call.1} parent=0 // pred_fallthru
    _
  // Predicated region
  $region34: #{tpu_custom_call.1} parent=0 // pred_check
    _
  $region35: #{tpu_custom_call.1} parent=0 // pred_check_branch
    %262 = sbr.rel (0) target = $region37
  $region36: #{tpu_custom_call.1} parent=0 // pred_region
    _
  $region37: #{tpu_custom_call.1} parent=0 // pred_fallthru
    _
  // Predicated region
  $region38: #{tpu_custom_call.1} parent=0 // pred_check
    _
  $region39: #{tpu_custom_call.1} parent=0 // pred_check_branch
    %264 = sbr.rel (0) target = $region41
  $region40: #{tpu_custom_call.1} parent=0 // pred_region
    _
  $region41: #{tpu_custom_call.1} parent=0 // pred_fallthru
    _

</llo_original>
